<compile_context>
chip_gen: v6e
topology: v6e:2x2x1
jax: 0.10.0
libtpu: 0.0.40
codegen_flags: <defaults>
</compile_context>

<pallas_src>
import jax
import jax.numpy as jnp
from jax.experimental import pallas as pl
from jax.experimental.pallas import tpu as pltpu

ENC_DIM = 140      # encoder output width (nn.Linear(140, 128))
ACT_DIM = 2        # action dimension
HID = 128          # hidden width
K_PAD = 144        # ENC_DIM + ACT_DIM + 2 zero pad (bf16-sublane friendly)
OUT_W = 8          # narrow output slab: [a0, a1, log_prob, 0, 0, 0, 0, 0]


def _gaussian_policy_kernel(x_ref, w1_ref, b1_ref, w2_ref, b2_ref,
                            wh_ref, bh_ref, out_ref):
    x = x_ref[...]                                             # (bt, 144) bf16
    eps = x[:, ENC_DIM:ENC_DIM + ACT_DIM].astype(jnp.float32)  # (bt, 2) f32

    # ---- fc: ReLU -> Linear(140,128) -> ReLU -> Linear(128,128) ----
    # ReLU over the whole slab is harmless: eps/pad columns multiply zero rows of w1.
    e = jnp.maximum(x, 0.0)
    h = jnp.dot(e, w1_ref[...], preferred_element_type=jnp.float32) + b1_ref[...]
    h = jnp.maximum(h, 0.0).astype(jnp.bfloat16)
    h = jnp.dot(h, w2_ref[...], preferred_element_type=jnp.float32) + b2_ref[...]

    # ---- fused heads: [mu || std_head] = ReLU(h) @ (Wmu||Wstd) + (bmu||bstd) ----
    hr = jnp.maximum(h, 0.0).astype(jnp.bfloat16)
    heads = jnp.dot(hr, wh_ref[...], preferred_element_type=jnp.float32) + bh_ref[...]
    mu = heads[:, 0:ACT_DIM]
    sigma = jnp.abs(heads[:, ACT_DIM:2 * ACT_DIM])   # matches torch.abs(self.std(...))

    # ---- Normal(mu, sigma).rsample() with externally supplied standard normals ----
    u = mu + sigma * eps
    a = jnp.tanh(u)

    # ---- log N(u; mu, sigma) summed over action dim; (u-mu)/sigma == eps exactly ----
    half_log_2pi = 0.5 * jnp.log(2.0 * jnp.pi)
    log_pi_u = jnp.sum(-0.5 * eps * eps - jnp.log(sigma) - half_log_2pi,
                       axis=-1, keepdims=True)

    # ---- tanh change of variables: sum(2*(log 2 - u - softplus(-2u))) ----
    neg2u = -2.0 * u
    softplus = jnp.maximum(neg2u, 0.0) + jnp.log1p(jnp.exp(-jnp.abs(neg2u)))
    correction = jnp.sum(2.0 * (jnp.log(2.0) - u - softplus),
                         axis=-1, keepdims=True)
    logp = log_pi_u - correction                      # (bt, 1)

    # ---- single narrow store: [a0, a1, log_prob, 0...] -> (bt, 8) ----
    pad = jnp.zeros((a.shape[0], OUT_W - ACT_DIM - 1), jnp.float32)
    out_ref[...] = jnp.concatenate([a, logp, pad], axis=-1)


def _round_up(x, m):
    return ((x + m - 1) // m) * m


def gaussian_policy_forward(encoding, eps, params, *, block_b=2048):
    """encoding: (B, 140) float, eps: (B, 2) float std normals, params: init_params().

    Returns (a, log_prob_a) with a: (B, 2), log_prob_a: (B,), matching the
    PyTorch module's forward (post-encoder)."""
    B, D = encoding.shape
    assert D == ENC_DIM and eps.shape == (B, ACT_DIM)
    w1, b1, w2, b2, wh, bh = params

    # One bf16 slab: [encoding | eps | zero pad]  (single contiguous DMA stream).
    slab = jnp.concatenate(
        [encoding.astype(jnp.bfloat16),
         eps.astype(jnp.bfloat16),
         jnp.zeros((B, K_PAD - ENC_DIM - ACT_DIM), jnp.bfloat16)], axis=-1)

    # Batch tile: multiple of 8, at most block_b; prefer >= 2 grid steps so the
    # "parallel" axis can be split across both v7x TensorCores.
    bt = max(8, min(block_b, _round_up(B, 8)))
    if B > 8 and _round_up(B, bt) // bt < 2:
        bt = _round_up(pl.cdiv(B, 2), 8)
    bp = _round_up(B, bt)
    if bp != B:
        slab = jnp.pad(slab, ((0, bp - B), (0, 0)))

    def act_spec(width):
        return pl.BlockSpec((bt, width), lambda i: (i, 0))

    def weight_spec(arr):
        # Constant index_map -> fetched once, stays VMEM-resident across the grid.
        return pl.BlockSpec(arr.shape, lambda i: (0, 0))

    weight_bytes = sum(int(p.size) * p.dtype.itemsize for p in params)
    cost = pl.CostEstimate(
        flops=2 * bp * (K_PAD * HID + HID * HID + HID * 2 * ACT_DIM),
        transcendentals=8 * bp,
        bytes_accessed=bp * K_PAD * 2 + bp * OUT_W * 4 + weight_bytes)

    packed = pl.pallas_call(
        _gaussian_policy_kernel,
        out_shape=jax.ShapeDtypeStruct((bp, OUT_W), jnp.float32),
        grid=(bp // bt,),
        in_specs=[act_spec(K_PAD),
                  weight_spec(w1), weight_spec(b1),
                  weight_spec(w2), weight_spec(b2),
                  weight_spec(wh), weight_spec(bh)],
        out_specs=pl.BlockSpec((bt, OUT_W), lambda i: (i, 0)),
        compiler_params=pltpu.CompilerParams(
            dimension_semantics=("parallel",),
            vmem_limit_bytes=32 * 1024 * 1024),
        cost_estimate=cost,
    )(slab, w1, b1, w2, b2, wh, bh)

    a = packed[:B, 0:ACT_DIM]
    log_prob_a = packed[:B, ACT_DIM]
    return a, log_prob_a


def init_params(key):
    """Synthetic parameters matching the PyTorch layer shapes.

    Weights are pre-transposed to (in, out); the two 128->2 heads are fused into
    one (128, 4) matmul; w1 is zero-padded from 140 to 144 rows so the eps / pad
    columns of the input slab fall on zero weight rows."""
    ks = jax.random.split(key, 8)

    def linear(kw, kb, fan_in, fan_out):
        bound = 1.0 / jnp.sqrt(fan_in)
        w = jax.random.uniform(kw, (fan_in, fan_out), jnp.float32, -bound, bound)
        b = jax.random.uniform(kb, (1, fan_out), jnp.float32, -bound, bound)
        return w, b

    w1, b1 = linear(ks[0], ks[1], ENC_DIM, HID)       # fc Linear(140, 128)
    w2, b2 = linear(ks[2], ks[3], HID, HID)           # fc Linear(128, 128)
    wmu, bmu = linear(ks[4], ks[5], HID, ACT_DIM)     # mu head Linear(128, 2)
    wstd, bstd = linear(ks[6], ks[7], HID, ACT_DIM)   # std head Linear(128, 2)

    w1p = jnp.concatenate([w1, jnp.zeros((K_PAD - ENC_DIM, HID), jnp.float32)], axis=0)
    wh = jnp.concatenate([wmu, wstd], axis=1)          # (128, 4)
    bh = jnp.concatenate([bmu, bstd], axis=1)          # (1, 4)
    return (w1p.astype(jnp.bfloat16), b1,
            w2.astype(jnp.bfloat16), b2,
            wh.astype(jnp.bfloat16), bh)


def _reference_forward(encoding, eps, params):
    """Pure-JAX reference mirroring the kernel's bf16 casts (validation only)."""
    w1, b1, w2, b2, wh, bh = params
    f32 = jnp.float32
    e = jnp.maximum(encoding.astype(jnp.bfloat16).astype(f32), 0.0)
    h = e @ w1.astype(f32)[:ENC_DIM] + b1
    h = jnp.maximum(h, 0.0).astype(jnp.bfloat16).astype(f32)
    h = h @ w2.astype(f32) + b2
    hr = jnp.maximum(h, 0.0).astype(jnp.bfloat16).astype(f32)
    heads = hr @ wh.astype(f32) + bh
    mu, sigma = heads[:, :ACT_DIM], jnp.abs(heads[:, ACT_DIM:])
    epsb = eps.astype(jnp.bfloat16).astype(f32)
    u = mu + sigma * epsb
    a = jnp.tanh(u)
    log_pi_u = jnp.sum(-0.5 * epsb * epsb - jnp.log(sigma)
                       - 0.5 * jnp.log(2.0 * jnp.pi), axis=-1)
    corr = jnp.sum(2.0 * (jnp.log(2.0) - u - jax.nn.softplus(-2.0 * u)), axis=-1)
    return a, log_pi_u - corr


if __name__ == "__main__":
    key = jax.random.PRNGKey(0)
    k_enc, k_eps, k_par = jax.random.split(key, 3)

    B = 8
    encoding = jax.random.normal(k_enc, (B, ENC_DIM), jnp.float32)  # encoder output
    eps = jax.random.normal(k_eps, (B, ACT_DIM), jnp.float32)       # rsample noise
    params = init_params(k_par)

    a, log_prob_a = gaussian_policy_forward(encoding, eps, params)
    jax.block_until_ready((a, log_prob_a))

    assert a.shape == (B, ACT_DIM) and log_prob_a.shape == (B,)
    assert bool(jnp.all(jnp.isfinite(a))) and bool(jnp.all(jnp.isfinite(log_prob_a)))
    assert bool(jnp.all(jnp.abs(a) <= 1.0))

    a_ref, lp_ref = _reference_forward(encoding, eps, params)
    assert bool(jnp.allclose(a, a_ref, atol=3e-2, rtol=3e-2))
    assert bool(jnp.allclose(log_prob_a, lp_ref, atol=5e-2, rtol=5e-2))
    print("KERNEL_OK")
</pallas_src>

<mosaic_0001>
module attributes {stable_mosaic.version = 11 : i64} {
  func.func @_gaussian_policy_kernel(%arg0: i32, %arg1: memref<8x144xbf16, #tpu.memory_space<vmem>>, %arg2: memref<144x128xbf16, #tpu.memory_space<vmem>>, %arg3: memref<1x128xf32, #tpu.memory_space<vmem>>, %arg4: memref<128x128xbf16, #tpu.memory_space<vmem>>, %arg5: memref<1x128xf32, #tpu.memory_space<vmem>>, %arg6: memref<128x4xbf16, #tpu.memory_space<vmem>>, %arg7: memref<1x4xf32, #tpu.memory_space<vmem>>, %arg8: memref<8x8xf32, #tpu.memory_space<vmem>>) attributes {dimension_semantics = [#tpu.dimension_semantics<parallel>], iteration_bounds = array<i64: 1>, scalar_prefetch = 0 : i64, scratch_operands = 0 : i64, tpu.core_type = #tpu.core_type<tc>, window_params = [{transform_indices = @transform_0, window_bounds = array<i64: 8, 144>}, {pipeline_mode = #tpu.pipeline_mode<synchronous>, transform_indices = @transform_1, window_bounds = array<i64: 144, 128>}, {pipeline_mode = #tpu.pipeline_mode<synchronous>, transform_indices = @transform_2, window_bounds = array<i64: 1, 128>}, {pipeline_mode = #tpu.pipeline_mode<synchronous>, transform_indices = @transform_3, window_bounds = array<i64: 128, 128>}, {pipeline_mode = #tpu.pipeline_mode<synchronous>, transform_indices = @transform_4, window_bounds = array<i64: 1, 128>}, {pipeline_mode = #tpu.pipeline_mode<synchronous>, transform_indices = @transform_5, window_bounds = array<i64: 128, 4>}, {pipeline_mode = #tpu.pipeline_mode<synchronous>, transform_indices = @transform_6, window_bounds = array<i64: 1, 4>}, {transform_indices = @transform_7, window_bounds = array<i64: 8, 8>}]} {
    %c0 = arith.constant 0 : index
    %c0_0 = arith.constant 0 : index
    %0 = vector.load %arg1[%c0, %c0_0] : memref<8x144xbf16, #tpu.memory_space<vmem>>, vector<8x144xbf16>
    %1 = vector.extract_strided_slice %0 {offsets = [0, 140], sizes = [8, 2], strides = [1, 1]} : vector<8x144xbf16> to vector<8x2xbf16>
    %2 = arith.extf %1 : vector<8x2xbf16> to vector<8x2xf32>
    %cst = arith.constant 0.000000e+00 : bf16
    %3 = vector.broadcast %cst : bf16 to vector<8x144xbf16>
    %4 = arith.maximumf %0, %3 : vector<8x144xbf16>
    %c0_1 = arith.constant 0 : index
    %c0_2 = arith.constant 0 : index
    %5 = vector.load %arg2[%c0_1, %c0_2] : memref<144x128xbf16, #tpu.memory_space<vmem>>, vector<144x128xbf16>
    %cst_3 = arith.constant dense<0.000000e+00> : vector<8x128xf32>
    %6 = tpu.matmul %4, %5, %cst_3 {dimension_numbers = #tpu.dot_dimension_numbers<[1], [0], [0], [1], [0, 0, 1, 1], [], []>} : vector<8x144xbf16>, vector<144x128xbf16>, vector<8x128xf32> -> vector<8x128xf32>
    %c0_4 = arith.constant 0 : index
    %c0_5 = arith.constant 0 : index
    %7 = vector.load %arg3[%c0_4, %c0_5] : memref<1x128xf32, #tpu.memory_space<vmem>>, vector<1x128xf32>
    %8 = vector.broadcast %7 : vector<1x128xf32> to vector<8x128xf32>
    %9 = arith.addf %6, %8 : vector<8x128xf32>
    %cst_6 = arith.constant 0.000000e+00 : f32
    %10 = vector.broadcast %cst_6 : f32 to vector<8x128xf32>
    %11 = arith.maximumf %9, %10 : vector<8x128xf32>
    %12 = arith.truncf %11 : vector<8x128xf32> to vector<8x128xbf16>
    %c0_7 = arith.constant 0 : index
    %c0_8 = arith.constant 0 : index
    %13 = vector.load %arg4[%c0_7, %c0_8] : memref<128x128xbf16, #tpu.memory_space<vmem>>, vector<128x128xbf16>
    %cst_9 = arith.constant dense<0.000000e+00> : vector<8x128xf32>
    %14 = tpu.matmul %12, %13, %cst_9 {dimension_numbers = #tpu.dot_dimension_numbers<[1], [0], [0], [1], [0, 0, 1, 1], [], []>} : vector<8x128xbf16>, vector<128x128xbf16>, vector<8x128xf32> -> vector<8x128xf32>
    %c0_10 = arith.constant 0 : index
    %c0_11 = arith.constant 0 : index
    %15 = vector.load %arg5[%c0_10, %c0_11] : memref<1x128xf32, #tpu.memory_space<vmem>>, vector<1x128xf32>
    %16 = vector.broadcast %15 : vector<1x128xf32> to vector<8x128xf32>
    %17 = arith.addf %14, %16 : vector<8x128xf32>
    %cst_12 = arith.constant 0.000000e+00 : f32
    %18 = vector.broadcast %cst_12 : f32 to vector<8x128xf32>
    %19 = arith.maximumf %17, %18 : vector<8x128xf32>
    %20 = arith.truncf %19 : vector<8x128xf32> to vector<8x128xbf16>
    %c0_13 = arith.constant 0 : index
    %c0_14 = arith.constant 0 : index
    %21 = vector.load %arg6[%c0_13, %c0_14] : memref<128x4xbf16, #tpu.memory_space<vmem>>, vector<128x4xbf16>
    %cst_15 = arith.constant dense<0.000000e+00> : vector<8x4xf32>
    %22 = tpu.matmul %20, %21, %cst_15 {dimension_numbers = #tpu.dot_dimension_numbers<[1], [0], [0], [1], [0, 0, 1, 1], [], []>} : vector<8x128xbf16>, vector<128x4xbf16>, vector<8x4xf32> -> vector<8x4xf32>
    %c0_16 = arith.constant 0 : index
    %c0_17 = arith.constant 0 : index
    %23 = vector.load %arg7[%c0_16, %c0_17] : memref<1x4xf32, #tpu.memory_space<vmem>>, vector<1x4xf32>
    %24 = vector.broadcast %23 : vector<1x4xf32> to vector<8x4xf32>
    %25 = arith.addf %22, %24 : vector<8x4xf32>
    %26 = vector.extract_strided_slice %25 {offsets = [0, 0], sizes = [8, 2], strides = [1, 1]} : vector<8x4xf32> to vector<8x2xf32>
    %27 = vector.extract_strided_slice %25 {offsets = [0, 2], sizes = [8, 2], strides = [1, 1]} : vector<8x4xf32> to vector<8x2xf32>
    %28 = math.absf %27 : vector<8x2xf32>
    %29 = arith.mulf %28, %2 : vector<8x2xf32>
    %30 = arith.addf %26, %29 : vector<8x2xf32>
    %31 = math.tanh %30 : vector<8x2xf32>
    %cst_18 = arith.constant 6.28318548 : f32
    %32 = math.log %cst_18 : f32
    %cst_19 = arith.constant 5.000000e-01 : f32
    %33 = arith.mulf %cst_19, %32 : f32
    %cst_20 = arith.constant -5.000000e-01 : f32
    %34 = vector.broadcast %cst_20 : f32 to vector<8x2xf32>
    %35 = arith.mulf %34, %2 : vector<8x2xf32>
    %36 = arith.mulf %35, %2 : vector<8x2xf32>
    %37 = math.log %28 : vector<8x2xf32>
    %38 = arith.subf %36, %37 : vector<8x2xf32>
    %39 = vector.broadcast %33 : f32 to vector<8x2xf32>
    %40 = arith.subf %38, %39 : vector<8x2xf32>
    %cst_21 = arith.constant dense<0.000000e+00> : vector<8xf32>
    %41 = vector.multi_reduction <add>, %40, %cst_21 [1] : vector<8x2xf32> to vector<8xf32>
    %42 = vector.shape_cast %41 : vector<8xf32> to vector<8x1xf32>
    %cst_22 = arith.constant -2.000000e+00 : f32
    %43 = vector.broadcast %cst_22 : f32 to vector<8x2xf32>
    %44 = arith.mulf %43, %30 : vector<8x2xf32>
    %cst_23 = arith.constant 0.000000e+00 : f32
    %45 = vector.broadcast %cst_23 : f32 to vector<8x2xf32>
    %46 = arith.maximumf %44, %45 : vector<8x2xf32>
    %47 = math.absf %44 : vector<8x2xf32>
    %cst_24 = arith.constant 0.000000e+00 : f32
    %48 = vector.broadcast %cst_24 : f32 to vector<8x2xf32>
    %49 = arith.subf %48, %47 : vector<8x2xf32>
    %50 = math.exp %49 : vector<8x2xf32>
    %51 = math.log1p %50 : vector<8x2xf32>
    %52 = arith.addf %46, %51 : vector<8x2xf32>
    %cst_25 = arith.constant 2.000000e+00 : f32
    %53 = math.log %cst_25 : f32
    %54 = vector.broadcast %53 : f32 to vector<8x2xf32>
    %55 = arith.subf %54, %30 : vector<8x2xf32>
    %56 = arith.subf %55, %52 : vector<8x2xf32>
    %cst_26 = arith.constant 2.000000e+00 : f32
    %57 = vector.broadcast %cst_26 : f32 to vector<8x2xf32>
    %58 = arith.mulf %57, %56 : vector<8x2xf32>
    %cst_27 = arith.constant dense<0.000000e+00> : vector<8xf32>
    %59 = vector.multi_reduction <add>, %58, %cst_27 [1] : vector<8x2xf32> to vector<8xf32>
    %60 = vector.shape_cast %59 : vector<8xf32> to vector<8x1xf32>
    %61 = arith.subf %42, %60 : vector<8x1xf32>
    %cst_28 = arith.constant 0.000000e+00 : f32
    %62 = vector.broadcast %cst_28 : f32 to vector<8x5xf32>
    %63 = tpu.concatenate %31, %61, %62 in 1 : vector<8x2xf32>, vector<8x1xf32>, vector<8x5xf32> -> vector<8x8xf32>
    %c0_29 = arith.constant 0 : index
    %c0_30 = arith.constant 0 : index
    %64 = vector.load %arg8[%c0_29, %c0_30] : memref<8x8xf32, #tpu.memory_space<vmem>>, vector<8x8xf32>
    tpu.vector_store %arg8[%c0_29, %c0_30], %63 {strides = array<i32>} : memref<8x8xf32, #tpu.memory_space<vmem>>, vector<8x8xf32>,
    return
  }
  func.func @transform_0(%arg0: i32) -> (i32, i32) {
    %c0_i32 = arith.constant 0 : i32
    %c0_i32_0 = arith.constant 0 : i32
    return %arg0, %c0_i32 : i32, i32
  }
  func.func @transform_1(%arg0: i32) -> (i32, i32) {
    %c0_i32 = arith.constant 0 : i32
    %c0_i32_0 = arith.constant 0 : i32
    %c0_i32_1 = arith.constant 0 : i32
    return %c0_i32, %c0_i32_0 : i32, i32
  }
  func.func @transform_2(%arg0: i32) -> (i32, i32) {
    %c0_i32 = arith.constant 0 : i32
    %c0_i32_0 = arith.constant 0 : i32
    %c0_i32_1 = arith.constant 0 : i32
    return %c0_i32, %c0_i32_0 : i32, i32
  }
  func.func @transform_3(%arg0: i32) -> (i32, i32) {
    %c0_i32 = arith.constant 0 : i32
    %c0_i32_0 = arith.constant 0 : i32
    %c0_i32_1 = arith.constant 0 : i32
    return %c0_i32, %c0_i32_0 : i32, i32
  }
  func.func @transform_4(%arg0: i32) -> (i32, i32) {
    %c0_i32 = arith.constant 0 : i32
    %c0_i32_0 = arith.constant 0 : i32
    %c0_i32_1 = arith.constant 0 : i32
    return %c0_i32, %c0_i32_0 : i32, i32
  }
  func.func @transform_5(%arg0: i32) -> (i32, i32) {
    %c0_i32 = arith.constant 0 : i32
    %c0_i32_0 = arith.constant 0 : i32
    %c0_i32_1 = arith.constant 0 : i32
    return %c0_i32, %c0_i32_0 : i32, i32
  }
  func.func @transform_6(%arg0: i32) -> (i32, i32) {
    %c0_i32 = arith.constant 0 : i32
    %c0_i32_0 = arith.constant 0 : i32
    %c0_i32_1 = arith.constant 0 : i32
    return %c0_i32, %c0_i32_0 : i32, i32
  }
  func.func @transform_7(%arg0: i32) -> (i32, i32) {
    %c0_i32 = arith.constant 0 : i32
    %c0_i32_0 = arith.constant 0 : i32
    return %arg0, %c0_i32 : i32, i32
  }
}

</mosaic_0001>

<llo_original>
// kernel: tpu_custom_call.1
$region0: #{tpu_custom_call.1}
  #allocation0 [shape = 'u32[]', space=smem, size = 0x4, offset = 0x4, fixed_abs, tag = 'smem constant byte address 0x4 - core index']
  #allocation1 [shape = 'u32[144,128]{1,0:T(1,128)}', space=vmem, size = 0x12000, scoped, tag = 'internal scratch']
  %s0 = inlined_call_operand.hbm [shape: bf16[8,144], index: 0, kind: input, shape index: {}]
  %s1 = inlined_call_operand.hbm [shape: bf16[144,128], index: 1, kind: input, shape index: {}]
  %s2 = inlined_call_operand.vmem [shape: f32[1,128], index: 2, kind: input, shape index: {}]
  %s3 = inlined_call_operand.vmem [shape: bf16[128,128], index: 3, kind: input, shape index: {}]
  %s4 = inlined_call_operand.vmem [shape: f32[1,128], index: 4, kind: input, shape index: {}]
  %s5 = inlined_call_operand.vmem [shape: bf16[128,4], index: 5, kind: input, shape index: {}]
  %s6 = inlined_call_operand.vmem [shape: f32[1,4], index: 6, kind: input, shape index: {}]
  %s7 = inlined_call_operand.hbm [shape: f32[8,8], index: 7, kind: output, shape index: {}]
  %s8 = sld [smem:[#allocation0]]
  $region46: #{tpu_custom_call.1} parent=0
    _
  %s10 = ssub.s32 1, %s8
  %s11 = scalar_select 0, %s10, %s8
  $region1: #{tpu_custom_call.1} parent=0
    #allocation2 [shape = 'u8[4096]{0}', space=vmem, size = 0x1000, scoped, tag = 'input window, operand 0, single buffered']
    #allocation3 [shape = 's32[1]{0}', space=sflag, size = 0x4, scoped, tag = 'scoped memory for tpu_custom_call.1']
    #allocation4 [shape = 's32[1]{0}', space=sflag, size = 0x4, scoped, tag = 'scoped memory for tpu_custom_call.1']
    #allocation5 [shape = 'u8[36864]{0}', space=vmem, size = 0x9000, scoped, tag = 'input window, operand 1, single buffered']
    #allocation6 [shape = 's32[1]{0}', space=sflag, size = 0x4, scoped, tag = 'scoped memory for tpu_custom_call.1']
    #allocation7 [shape = 'u8[4096]{0}', space=vmem, size = 0x1000, scoped, tag = 'output window, operand 0, single buffered']
    %12 = vsyncpa [#allocation3], 0
    %13 = vsyncpa [#allocation6], 0
    %14 = vsyncpa [#allocation4], 0
    // Predicated region
    $region2: #{tpu_custom_call.1} parent=1 // pred_check
      _
    $region3: #{tpu_custom_call.1} parent=1 // pred_check_branch
      %16 = sbr.rel (0) target = $region5
    $region4: #{tpu_custom_call.1} parent=1 // pred_region
      %s18 = ssub.s32 128, 128
      %19 = vsyncadd [#allocation3], %s18
      %s21 = sshll.u32 [#allocation2], 4
      %s22 = int_to_ptr.vmem [resolvable:$true] %s21
      %24 = dma.hbm_to_vmem [thread:$0]  %s0, 128, %s22, [#allocation3]
    $region5: #{tpu_custom_call.1} parent=1 // pred_fallthru
      _
    // Predicated region
    $region6: #{tpu_custom_call.1} parent=1 // pred_check
      _
    $region7: #{tpu_custom_call.1} parent=1 // pred_check_branch
      %26 = sbr.rel (0) target = $region9
    $region8: #{tpu_custom_call.1} parent=1 // pred_region
      %s28 = ssub.s32 1152, 1152
      %29 = vsyncadd [#allocation6], %s28
      %s30 = sshll.u32 [#allocation5], 4
      %s31 = int_to_ptr.vmem [resolvable:$true] %s30
      %36 = dma.hbm_to_vmem [thread:$0]  %s1, 1152, %s31, [#allocation6], 64, 64, 4
    $region9: #{tpu_custom_call.1} parent=1 // pred_fallthru
      _
    // Predicated region
    $region10: #{tpu_custom_call.1} parent=1 // pred_check
      _
    $region11: #{tpu_custom_call.1} parent=1 // pred_check_branch
      %38 = sbr.rel (0) target = $region13
    $region12: #{tpu_custom_call.1} parent=1 // pred_region
      _
    $region13: #{tpu_custom_call.1} parent=1 // pred_fallthru
      _
    // Predicated region
    $region14: #{tpu_custom_call.1} parent=1 // pred_check
      _
    $region15: #{tpu_custom_call.1} parent=1 // pred_check_branch
      %40 = sbr.rel (0) target = $region17
    $region16: #{tpu_custom_call.1} parent=1 // pred_region
      _
    $region17: #{tpu_custom_call.1} parent=1 // pred_fallthru
      _
    // Predicated region
    $region18: #{tpu_custom_call.1} parent=1 // pred_check
      _
    $region19: #{tpu_custom_call.1} parent=1 // pred_check_branch
      %42 = sbr.rel (0) target = $region21
    $region20: #{tpu_custom_call.1} parent=1 // pred_region
      _
    $region21: #{tpu_custom_call.1} parent=1 // pred_fallthru
      _
    // Predicated region
    $region22: #{tpu_custom_call.1} parent=1 // pred_check
      _
    $region23: #{tpu_custom_call.1} parent=1 // pred_check_branch
      %44 = sbr.rel (0) target = $region25
    $region24: #{tpu_custom_call.1} parent=1 // pred_region
      _
    $region25: #{tpu_custom_call.1} parent=1 // pred_fallthru
      _
    // Predicated region
    $region26: #{tpu_custom_call.1} parent=1 // pred_check
      _
    $region27: #{tpu_custom_call.1} parent=1 // pred_check_branch
      %46 = sbr.rel (0) target = $region29
    $region28: #{tpu_custom_call.1} parent=1 // pred_region
      _
    $region29: #{tpu_custom_call.1} parent=1 // pred_fallthru
      _
    // Predicated region
    $region30: #{tpu_custom_call.1} parent=1 // pred_check
      _
    $region31: #{tpu_custom_call.1} parent=1 // pred_check_branch
      %48 = sbr.rel (0) target = $region33
    $region32: #{tpu_custom_call.1} parent=1 // pred_region
      %49 = dma.done [#allocation3], 128
    $region33: #{tpu_custom_call.1} parent=1 // pred_fallthru
      _
    // Predicated region
    $region34: #{tpu_custom_call.1} parent=1 // pred_check
      _
    $region35: #{tpu_custom_call.1} parent=1 // pred_check_branch
      %51 = sbr.rel (0) target = $region37
    $region36: #{tpu_custom_call.1} parent=1 // pred_region
      %52 = dma.done [#allocation6], 1152
    $region37: #{tpu_custom_call.1} parent=1 // pred_fallthru
      _
    %v54 = vld [vmem:[#allocation2] sm:$0xff]
    %56 = vrot.lane.b32.xlu0 %v54, 116
    %v57 = vpop.permute.xlu0 %56
    %v58 = vrot.slane %v57, 4
    %v60 = vunpack.c.l.bf16 %v58
    %v61 = vmax.bf16 %v54, 0
    %v62 = vld [vmem:[#allocation5] sm:$0xf]
    %v63 = vld [vmem:[#allocation5 + $0x4] sm:$0xf]
    %v64 = vld [vmem:[#allocation5 + $0x8] sm:$0xf]
    %v65 = vld [vmem:[#allocation5 + $0xc] sm:$0xf]
    %v66 = vld [vmem:[#allocation5 + $0x10] sm:$0xf]
    %v67 = vld [vmem:[#allocation5 + $0x14] sm:$0xf]
    %v68 = vld [vmem:[#allocation5 + $0x18] sm:$0xf]
    %v69 = vld [vmem:[#allocation5 + $0x1c] sm:$0xf]
    %v70 = vld [vmem:[#allocation5 + $0x20] sm:$0xf]
    %v71 = vld [vmem:[#allocation5 + $0x24] sm:$0xf]
    %v72 = vld [vmem:[#allocation5 + $0x28] sm:$0xf]
    %v73 = vld [vmem:[#allocation5 + $0x2c] sm:$0xf]
    %v74 = vld [vmem:[#allocation5 + $0x30] sm:$0xf]
    %v75 = vld [vmem:[#allocation5 + $0x34] sm:$0xf]
    %v76 = vld [vmem:[#allocation5 + $0x38] sm:$0xf]
    %v77 = vld [vmem:[#allocation5 + $0x3c] sm:$0xf]
    %v78 = vld [vmem:[#allocation5 + $0x40] sm:$0xf]
    %v79 = vld [vmem:[#allocation5 + $0x44] sm:$0xf]
    %v80 = vld [vmem:[%s2] sm:$0x1]
    %v82 = vlaneseq
    %v83 = vshrl.u32 %v82, 7
    %v84 = vsub.s32 0, %v83
    %v85 = vrot.slane %v80, %v84
    %v88 = vunpack.c.l.b16 %v61
    %v89 = vunpack.c.h.b16 %v61
    %v90 = vpack.c.b16 %v88, %v88
    %v91 = vpack.c.b16 %v89, %v89
    %v111 = vunpack.c.l.b16 %v62
    %v112 = vunpack.c.l.b16 %v63
    %v113 = vunpack.c.l.b16 %v64
    %v114 = vunpack.c.l.b16 %v65
    %v115 = vunpack.c.l.b16 %v66
    %v116 = vunpack.c.l.b16 %v67
    %v117 = vunpack.c.l.b16 %v68
    %v118 = vunpack.c.l.b16 %v69
    %v119 = vunpack.c.l.b16 %v70
    %v120 = vunpack.c.l.b16 %v71
    %v121 = vunpack.c.l.b16 %v72
    %v122 = vunpack.c.l.b16 %v73
    %v123 = vunpack.c.l.b16 %v74
    %v124 = vunpack.c.l.b16 %v75
    %v125 = vunpack.c.l.b16 %v76
    %v126 = vunpack.c.l.b16 %v77
    %v127 = vunpack.c.l.b16 %v78
    %v128 = vunpack.c.l.b16 %v79
    %v129 = vpack.c.b16 %v112, %v111
    %v130 = vpack.c.b16 %v114, %v113
    %v131 = vpack.c.b16 %v116, %v115
    %v132 = vpack.c.b16 %v118, %v117
    %v133 = vpack.c.b16 %v120, %v119
    %v134 = vpack.c.b16 %v122, %v121
    %v135 = vpack.c.b16 %v124, %v123
    %v136 = vpack.c.b16 %v126, %v125
    %v137 = vpack.c.b16 %v128, %v127
    %vm147 = vcmask 130048
    %v149 = vsel %vm147, %v91, 0
    %151 = vmatprep.subr.bf16.mxu0 0
    %152 = vmatpush1.bf16.msra.mxu0 %v136
    %153 = vmatprep.subr.bf16.mxu0 0
    %154 = vmatpush1.bf16.msra.mxu0 %v135
    %155 = vmatprep.subr.bf16.mxu0 0
    %156 = vmatpush1.bf16.msra.mxu0 %v134
    %157 = vmatprep.subr.bf16.mxu0 0
    %158 = vmatpush1.bf16.msra.mxu0 %v133
    %159 = vmatprep.subr.bf16.mxu0 0
    %160 = vmatpush1.bf16.msra.mxu0 %v132
    %161 = vmatprep.subr.bf16.mxu0 0
    %162 = vmatpush1.bf16.msra.mxu0 %v131
    %163 = vmatprep.subr.bf16.mxu0 0
    %164 = vmatpush1.bf16.msra.mxu0 %v130
    %165 = vmatprep.subr.bf16.mxu0 0
    %166 = vmatpush1.bf16.msra.mxu0 %v129
    %167 = vmatprep.subr.bf16.mxu0 0
    %168 = vmatpush2.bf16.msra.mxu0 0
    %169 = vmatprep.subr.bf16.mxu0 0
    %170 = vmatpush2.bf16.msra.mxu0 0
    %171 = vmatprep.subr.bf16.mxu0 0
    %172 = vmatpush2.bf16.msra.mxu0 0
    %173 = vmatprep.subr.bf16.mxu0 0
    %174 = vmatpush2.bf16.msra.mxu0 0
    %175 = vmatprep.subr.bf16.mxu0 0
    %176 = vmatpush2.bf16.msra.mxu0 0
    %177 = vmatprep.subr.bf16.mxu0 0
    %178 = vmatpush2.bf16.msra.mxu0 0
    %179 = vmatprep.subr.bf16.mxu0 0
    %180 = vmatpush2.bf16.msra.mxu0 0
    %181 = vmatprep.subr.bf16.mxu0 0
    %182 = vmatpush2.bf16.msra.mxu0 %v137
    %183 = vmatprep.mubr.bf16.mxu0 %v149
    %184 = vmatmul.mubr.bf16.gmra.mxu0 %v90
    %v185 = vpop.f32.mrf.mxu0
    %v186 = vadd.f32 %v85, %v185
    %v187 = vpop.f32.mrf.mxu0
    %v188 = vpop.f32.mrf.mxu0
    %v189 = vpop.f32.mrf.mxu0
    %190 = vdwg.mxu0
    %v191 = vmax.f32 %v186, 0.0
    %v192 = vpack.c.bf16 %v191, %v191
    %v193 = vld [vmem:[%s3] sm:$0xf]
    %v194 = vld [vmem:[%s3 + $0x4] sm:$0xf]
    %v195 = vld [vmem:[%s3 + $0x8] sm:$0xf]
    %v196 = vld [vmem:[%s3 + $0xc] sm:$0xf]
    %v197 = vld [vmem:[%s3 + $0x10] sm:$0xf]
    %v198 = vld [vmem:[%s3 + $0x14] sm:$0xf]
    %v199 = vld [vmem:[%s3 + $0x18] sm:$0xf]
    %v200 = vld [vmem:[%s3 + $0x1c] sm:$0xf]
    %v201 = vld [vmem:[%s3 + $0x20] sm:$0xf]
    %v202 = vld [vmem:[%s3 + $0x24] sm:$0xf]
    %v203 = vld [vmem:[%s3 + $0x28] sm:$0xf]
    %v204 = vld [vmem:[%s3 + $0x2c] sm:$0xf]
    %v205 = vld [vmem:[%s3 + $0x30] sm:$0xf]
    %v206 = vld [vmem:[%s3 + $0x34] sm:$0xf]
    %v207 = vld [vmem:[%s3 + $0x38] sm:$0xf]
    %v208 = vld [vmem:[%s3 + $0x3c] sm:$0xf]
    %v209 = vld [vmem:[%s4] sm:$0x1]
    %v211 = vlaneseq
    %v212 = vshrl.u32 %v211, 7
    %v213 = vsub.s32 0, %v212
    %v214 = vrot.slane %v209, %v213
    %v232 = vunpack.c.l.b16 %v193
    %v233 = vunpack.c.l.b16 %v194
    %v234 = vunpack.c.l.b16 %v195
    %v235 = vunpack.c.l.b16 %v196
    %v236 = vunpack.c.l.b16 %v197
    %v237 = vunpack.c.l.b16 %v198
    %v238 = vunpack.c.l.b16 %v199
    %v239 = vunpack.c.l.b16 %v200
    %v240 = vunpack.c.l.b16 %v201
    %v241 = vunpack.c.l.b16 %v202
    %v242 = vunpack.c.l.b16 %v203
    %v243 = vunpack.c.l.b16 %v204
    %v244 = vunpack.c.l.b16 %v205
    %v245 = vunpack.c.l.b16 %v206
    %v246 = vunpack.c.l.b16 %v207
    %v247 = vunpack.c.l.b16 %v208
    %v248 = vpack.c.b16 %v233, %v232
    %v249 = vpack.c.b16 %v235, %v234
    %v250 = vpack.c.b16 %v237, %v236
    %v251 = vpack.c.b16 %v239, %v238
    %v252 = vpack.c.b16 %v241, %v240
    %v253 = vpack.c.b16 %v243, %v242
    %v254 = vpack.c.b16 %v245, %v244
    %v255 = vpack.c.b16 %v247, %v246
    %264 = vmatprep.subr.bf16.mxu0 0
    %265 = vmatpush1.bf16.msra.mxu0 %v255
    %266 = vmatprep.subr.bf16.mxu0 0
    %267 = vmatpush1.bf16.msra.mxu0 %v254
    %268 = vmatprep.subr.bf16.mxu0 0
    %269 = vmatpush1.bf16.msra.mxu0 %v253
    %270 = vmatprep.subr.bf16.mxu0 0
    %271 = vmatpush1.bf16.msra.mxu0 %v252
    %272 = vmatprep.subr.bf16.mxu0 0
    %273 = vmatpush1.bf16.msra.mxu0 %v251
    %274 = vmatprep.subr.bf16.mxu0 0
    %275 = vmatpush1.bf16.msra.mxu0 %v250
    %276 = vmatprep.subr.bf16.mxu0 0
    %277 = vmatpush1.bf16.msra.mxu0 %v249
    %278 = vmatprep.subr.bf16.mxu0 0
    %279 = vmatpush1.bf16.msra.mxu0 %v248
    %280 = vmatprep.subr.bf16.mxu0 0
    %281 = vmatpush2.bf16.msra.mxu0 0
    %282 = vmatprep.subr.bf16.mxu0 0
    %283 = vmatpush2.bf16.msra.mxu0 0
    %284 = vmatprep.subr.bf16.mxu0 0
    %285 = vmatpush2.bf16.msra.mxu0 0
    %286 = vmatprep.subr.bf16.mxu0 0
    %287 = vmatpush2.bf16.msra.mxu0 0
    %288 = vmatprep.subr.bf16.mxu0 0
    %289 = vmatpush2.bf16.msra.mxu0 0
    %290 = vmatprep.subr.bf16.mxu0 0
    %291 = vmatpush2.bf16.msra.mxu0 0
    %292 = vmatprep.subr.bf16.mxu0 0
    %293 = vmatpush2.bf16.msra.mxu0 0
    %294 = vmatprep.subr.bf16.mxu0 0
    %295 = vmatpush2.bf16.msra.mxu0 0
    %296 = vmatprep.mubr.bf16.mxu0 0
    %297 = vmatmul.mubr.bf16.gmra.mxu0 %v192
    %v298 = vpop.f32.mrf.mxu0
    %v299 = vadd.f32 %v214, %v298
    %v300 = vpop.f32.mrf.mxu0
    %v301 = vpop.f32.mrf.mxu0
    %v302 = vpop.f32.mrf.mxu0
    %303 = vdwg.mxu0
    %v304 = vmax.f32 %v299, 0.0
    %v305 = vpack.c.bf16 %v304, %v304
    %v306 = vld [vmem:[%s5] sm:$0xf]
    %v307 = vld [vmem:[%s5 + $0x4] sm:$0xf]
    %v308 = vld [vmem:[%s5 + $0x8] sm:$0xf]
    %v309 = vld [vmem:[%s5 + $0xc] sm:$0xf]
    %v310 = vld [vmem:[%s5 + $0x10] sm:$0xf]
    %v311 = vld [vmem:[%s5 + $0x14] sm:$0xf]
    %v312 = vld [vmem:[%s5 + $0x18] sm:$0xf]
    %v313 = vld [vmem:[%s5 + $0x1c] sm:$0xf]
    %v314 = vld [vmem:[%s5 + $0x20] sm:$0xf]
    %v315 = vld [vmem:[%s5 + $0x24] sm:$0xf]
    %v316 = vld [vmem:[%s5 + $0x28] sm:$0xf]
    %v317 = vld [vmem:[%s5 + $0x2c] sm:$0xf]
    %v318 = vld [vmem:[%s5 + $0x30] sm:$0xf]
    %v319 = vld [vmem:[%s5 + $0x34] sm:$0xf]
    %v320 = vld [vmem:[%s5 + $0x38] sm:$0xf]
    %v321 = vld [vmem:[%s5 + $0x3c] sm:$0xf]
    %v322 = vld [vmem:[%s6] sm:$0x1]
    %v324 = vlaneseq
    %v325 = vshrl.u32 %v324, 7
    %v326 = vsub.s32 0, %v325
    %v327 = vrot.slane %v322, %v326
    %v345 = vunpack.c.l.b16 %v306
    %v346 = vunpack.c.l.b16 %v307
    %v347 = vunpack.c.l.b16 %v308
    %v348 = vunpack.c.l.b16 %v309
    %v349 = vunpack.c.l.b16 %v310
    %v350 = vunpack.c.l.b16 %v311
    %v351 = vunpack.c.l.b16 %v312
    %v352 = vunpack.c.l.b16 %v313
    %v353 = vunpack.c.l.b16 %v314
    %v354 = vunpack.c.l.b16 %v315
    %v355 = vunpack.c.l.b16 %v316
    %v356 = vunpack.c.l.b16 %v317
    %v357 = vunpack.c.l.b16 %v318
    %v358 = vunpack.c.l.b16 %v319
    %v359 = vunpack.c.l.b16 %v320
    %v360 = vunpack.c.l.b16 %v321
    %v361 = vpack.c.b16 %v346, %v345
    %v362 = vpack.c.b16 %v348, %v347
    %v363 = vpack.c.b16 %v350, %v349
    %v364 = vpack.c.b16 %v352, %v351
    %v365 = vpack.c.b16 %v354, %v353
    %v366 = vpack.c.b16 %v356, %v355
    %v367 = vpack.c.b16 %v358, %v357
    %v368 = vpack.c.b16 %v360, %v359
    %377 = vmatprep.subr.bf16.mxu0 0
    %378 = vmatpush1.bf16.msra.mxu0 %v368
    %379 = vmatprep.subr.bf16.mxu0 0
    %380 = vmatpush1.bf16.msra.mxu0 %v367
    %381 = vmatprep.subr.bf16.mxu0 0
    %382 = vmatpush1.bf16.msra.mxu0 %v366
    %383 = vmatprep.subr.bf16.mxu0 0
    %384 = vmatpush1.bf16.msra.mxu0 %v365
    %385 = vmatprep.subr.bf16.mxu0 0
    %386 = vmatpush1.bf16.msra.mxu0 %v364
    %387 = vmatprep.subr.bf16.mxu0 0
    %388 = vmatpush1.bf16.msra.mxu0 %v363
    %389 = vmatprep.subr.bf16.mxu0 0
    %390 = vmatpush1.bf16.msra.mxu0 %v362
    %391 = vmatprep.subr.bf16.mxu0 0
    %392 = vmatpush1.bf16.msra.mxu0 %v361
    %393 = vmatprep.subr.bf16.mxu0 0
    %394 = vmatpush2.bf16.msra.mxu0 0
    %395 = vmatprep.subr.bf16.mxu0 0
    %396 = vmatpush2.bf16.msra.mxu0 0
    %397 = vmatprep.subr.bf16.mxu0 0
    %398 = vmatpush2.bf16.msra.mxu0 0
    %399 = vmatprep.subr.bf16.mxu0 0
    %400 = vmatpush2.bf16.msra.mxu0 0
    %401 = vmatprep.subr.bf16.mxu0 0
    %402 = vmatpush2.bf16.msra.mxu0 0
    %403 = vmatprep.subr.bf16.mxu0 0
    %404 = vmatpush2.bf16.msra.mxu0 0
    %405 = vmatprep.subr.bf16.mxu0 0
    %406 = vmatpush2.bf16.msra.mxu0 0
    %407 = vmatprep.subr.bf16.mxu0 0
    %408 = vmatpush2.bf16.msra.mxu0 0
    %409 = vmatprep.mubr.bf16.mxu0 0
    %410 = vmatmul.mubr.bf16.gmra.mxu0 %v305
    %v411 = vpop.f32.mrf.mxu0
    %v412 = vadd.f32 %v327, %v411
    %v413 = vpop.f32.mrf.mxu0
    %v414 = vpop.f32.mrf.mxu0
    %v415 = vpop.f32.mrf.mxu0
    %416 = vdwg.mxu0
    %v417 = vand.u32 2147483647, %v412
    %419 = vrot.lane.b32.xlu0 %v60, 2
    %v420 = vpop.permute.xlu0 %419
    %v422 = vmul.f32 %v417, %v420
    %424 = vrot.lane.b32.xlu0 %v422, 126
    %v425 = vpop.permute.xlu0 %424
    %v427 = vadd.f32 %v412, %v425
    %v428 = vtanh.pop %v427
    %v429 = vmul.f32 %v60, -0.5
    %v430 = vmul.f32 %v429, %v60
    %v431 = vlog2.pop %v417
    %v432 = vmul.f32 %v431, 0.6931472
    %434 = vrot.lane.b32.xlu0 %v432, 126
    %v435 = vpop.permute.xlu0 %434
    %v437 = vsub.f32 %v430, %v435
    %v438 = vsub.f32 %v437, 0.9189385
    %vm439 = vcmask 15360
    %v440 = vsel %vm439, %v438, 0.0
    %441 = vadd.xlane.f32.xlu0 %v440
    %v442 = vpop.xlane.xlu0 %441
    %v443 = vmul.f32 %v427, -2.0
    %v444 = vmax.f32 %v443, 0.0
    %v445 = vand.u32 2147483647, %v443
    %v446 = vsub.f32 0.0, %v445
    %v447 = vmul.f32 %v446, 1.442695
    %v448 = vpow.pop %v447
    %v449 = vadd.f32 %v448, 1.0
    %v450 = vlog2.pop %v449
    %v451 = vmul.f32 %v450, 0.6931472
    %v452 = vmul.f32 -0.5, %v448
    %v453 = vadd.f32 %v452, 1.0
    %v454 = vmul.f32 %v453, %v448
    %v455 = vand.u32 2147483647, %v448
    %vm456 = vcmp.lt.f32.partialorder %v455, 0.0004427343
    %v457 = vsel %vm456, %v454, %v451
    %v458 = vadd.f32 %v444, %v457
    %v459 = vsub.f32 0.6931472, %v427
    %v460 = vsub.f32 %v459, %v458
    %v461 = vmul.f32 %v460, 2.0
    %v462 = vsel %vm439, %v461, 0.0
    %463 = vadd.xlane.f32.xlu0 %v462
    %v464 = vpop.xlane.xlu0 %463
    %v465 = vsub.f32 %v442, %v464
    %v466 = vsel %vm439, %v428, %v465
    %vm467 = vcmask 23552
    %v468 = vsel %vm467, %v466, 0.0
    %vm469 = vcmask 64512
    %470 = vst.msk [vmem:[#allocation7] sm:$0xff] %vm469, %v468
    // Predicated region
    $region38: #{tpu_custom_call.1} parent=1 // pred_check
      _
    $region39: #{tpu_custom_call.1} parent=1 // pred_check_branch
      %472 = sbr.rel (0) target = $region41
    $region40: #{tpu_custom_call.1} parent=1 // pred_region
      %s474 = ssub.s32 128, 128
      %475 = vsyncadd [#allocation4], %s474
      %s477 = sshll.u32 [#allocation7], 4
      %s478 = int_to_ptr.vmem [resolvable:$true] %s477
      %480 = dma.vmem_to_hbm [thread:$0]  %s478, 128, %s7, [#allocation4]
    $region41: #{tpu_custom_call.1} parent=1 // pred_fallthru
      _
    // Predicated region
    $region42: #{tpu_custom_call.1} parent=1 // pred_check
      _
    $region43: #{tpu_custom_call.1} parent=1 // pred_check_branch
      %482 = sbr.rel (0) target = $region45
    $region44: #{tpu_custom_call.1} parent=1 // pred_region
      %483 = dma.done [#allocation4], 128
    $region45: #{tpu_custom_call.1} parent=1 // pred_fallthru
      _
    %484 = vsyncpa [#allocation3], 1
    %485 = vsyncpa [#allocation6], 1
    %486 = vsyncpa [#allocation4], 1

</llo_original>
